<compile_context>
chip_gen: v5e
topology: v5e:2x2
jax: 0.10.0
libtpu: 0.0.40
codegen_flags: <defaults>
</compile_context>

<pallas_src>
import jax
import jax.numpy as jnp
from jax.experimental import pallas as pl
from jax.experimental.pallas import tpu as pltpu


def _copy_kernel(x_ref, o_ref):
    # identity copy of one (block_rows, LANE) lane-dense tile
    o_ref[...] = x_ref[...]


def _round_up(x, m):
    return ((x + m - 1) // m) * m


def _materialized_copy(x):
    """Identity copy via Pallas using large, (8,128)-aligned, lane-dense tiles."""
    total = x.size
    itemsize = jnp.dtype(x.dtype).itemsize

    # Lane-dense retiling of the flat buffer.
    LANE = min(1024, _round_up(total, 128))        # multiple of 128
    rows_total = pl.cdiv(total, LANE)
    # Sublane-aligned row block; cap at 512 rows -> ~2 MiB per f32 tile, so
    # 2 buffers x (in + out) = 4x tile stays well under every chip's default
    # scoped-VMEM limit (v5e 16 MiB, v6e/v7x 32 MiB).
    block_rows = min(512, _round_up(rows_total, 8))
    rows_padded = _round_up(rows_total, block_rows)

    flat = x.reshape(-1)
    padded = rows_padded * LANE
    if padded != total:
        # Pad to a full tile so every DMA is full-width and unmasked.
        flat = jnp.pad(flat, (0, padded - total))
    x2 = flat.reshape(rows_padded, LANE)

    grid = (rows_padded // block_rows,)

    out = pl.pallas_call(
        _copy_kernel,
        out_shape=jax.ShapeDtypeStruct((rows_padded, LANE), x.dtype),
        grid_spec=pltpu.PrefetchScalarGridSpec(
            num_scalar_prefetch=0,
            grid=grid,
            in_specs=[pl.BlockSpec((block_rows, LANE), lambda i: (i, 0))],
            out_specs=pl.BlockSpec((block_rows, LANE), lambda i: (i, 0)),
        ),
        compiler_params=pltpu.CompilerParams(
            dimension_semantics=("parallel",),
        ),
        cost_estimate=pl.CostEstimate(
            flops=0,
            transcendentals=0,
            bytes_accessed=2 * total * itemsize,
        ),
    )(x2)

    return out.reshape(-1)[:total]


def unflatten(x, C=128, H=7, W=7, *, materialize=False):
    """Reproduces Unflatten.forward: (N, C*H*W) -> (N, C, H, W).

    Default path is a metadata-only reshape (zero HBM traffic), matching the
    semantics of torch `.view` on a contiguous tensor.  Set materialize=True
    to force a physical copy through the Pallas kernel.
    """
    N = x.shape[0]
    assert x.size == N * C * H * W, (
        f"expected {N * C * H * W} elements, got {x.size}")
    if materialize:
        return _materialized_copy(x).reshape(N, C, H, W)
    # Pure view: no kernel, no copy — this is the real forward.
    return x.reshape(N, C, H, W)


if __name__ == "__main__":
    # Small shapes consistent with the module: N=2, C=4, H=4, W=8 (C*H*W=128).
    N, C, H, W = 2, 4, 4, 8
    key = jax.random.PRNGKey(0)
    x = jax.random.normal(key, (N, C * H * W), dtype=jnp.float32)

    ref = x.reshape(N, C, H, W)

    # Fast (view) path — what the module's forward actually is.
    out_view = jax.block_until_ready(unflatten(x, C, H, W))

    # Pallas copy path — exercised once so the kernel compiles & runs on TPU.
    out_copy = jax.block_until_ready(unflatten(x, C, H, W, materialize=True))

    assert out_view.shape == (N, C, H, W)
    assert out_copy.shape == (N, C, H, W)
    assert out_view.dtype == x.dtype and out_copy.dtype == x.dtype
    assert bool(jnp.array_equal(out_view, ref))
    assert bool(jnp.array_equal(out_copy, ref))

    print("KERNEL_OK")
</pallas_src>

<mosaic_0001>
module attributes {stable_mosaic.version = 11 : i64} {
  func.func @_copy_kernel(%arg0: i32, %arg1: memref<8x256xf32, #tpu.memory_space<vmem>>, %arg2: memref<8x256xf32, #tpu.memory_space<vmem>>) attributes {dimension_semantics = [#tpu.dimension_semantics<parallel>], iteration_bounds = array<i64: 1>, scalar_prefetch = 0 : i64, scratch_operands = 0 : i64, tpu.core_type = #tpu.core_type<tc>, window_params = [{transform_indices = @transform_0, window_bounds = array<i64: 8, 256>}, {transform_indices = @transform_1, window_bounds = array<i64: 8, 256>}]} {
    %c0 = arith.constant 0 : index
    %c0_0 = arith.constant 0 : index
    %0 = vector.load %arg1[%c0, %c0_0] : memref<8x256xf32, #tpu.memory_space<vmem>>, vector<8x256xf32>
    %c0_1 = arith.constant 0 : index
    %c0_2 = arith.constant 0 : index
    %1 = vector.load %arg2[%c0_1, %c0_2] : memref<8x256xf32, #tpu.memory_space<vmem>>, vector<8x256xf32>
    tpu.vector_store %arg2[%c0_1, %c0_2], %0 {strides = array<i32>} : memref<8x256xf32, #tpu.memory_space<vmem>>, vector<8x256xf32>,
    return
  }
  func.func @transform_0(%arg0: i32) -> (i32, i32) {
    %c0_i32 = arith.constant 0 : i32
    %c0_i32_0 = arith.constant 0 : i32
    return %arg0, %c0_i32 : i32, i32
  }
  func.func @transform_1(%arg0: i32) -> (i32, i32) {
    %c0_i32 = arith.constant 0 : i32
    %c0_i32_0 = arith.constant 0 : i32
    return %arg0, %c0_i32 : i32, i32
  }
}

</mosaic_0001>

<llo_original>
// kernel: tpu_custom_call.1
$region0: #{tpu_custom_call.1}
  #allocation0 [shape = 'u32[]', space=smem, size = 0x4, offset = 0x4, fixed_abs, tag = 'smem constant byte address 0x4 - core index']
  #allocation1 [shape = 'u32[72,128]{1,0:T(1,128)}', space=vmem, size = 0x9000, scoped, tag = 'internal scratch']
  %s0 = inlined_call_operand.hbm [shape: f32[8,256], index: 0, kind: input, shape index: {}]
  %s1 = inlined_call_operand.hbm [shape: f32[8,256], index: 1, kind: output, shape index: {}]
  %s2 = sld [smem:[#allocation0]]
  $region18: #{tpu_custom_call.1} parent=0
    _
  %s4 = ssub.s32 1, %s2
  %s5 = scalar_select 0, %s4, %s2
  $region1: #{tpu_custom_call.1} parent=0
    #allocation2 [shape = 'u8[8192]{0}', space=vmem, size = 0x2000, scoped, tag = 'input window, operand 0, single buffered']
    #allocation3 [shape = 's32[1]{0}', space=sflag, size = 0x4, scoped, tag = 'scoped memory for tpu_custom_call.1']
    #allocation4 [shape = 's32[1]{0}', space=sflag, size = 0x4, scoped, tag = 'scoped memory for tpu_custom_call.1']
    #allocation5 [shape = 'u8[8192]{0}', space=vmem, size = 0x2000, scoped, tag = 'output window, operand 0, single buffered']
    %6 = vsyncpa [#allocation3], 0
    %7 = vsyncpa [#allocation4], 0
    // Predicated region
    $region2: #{tpu_custom_call.1} parent=1 // pred_check
      _
    $region3: #{tpu_custom_call.1} parent=1 // pred_check_branch
      %9 = sbr.rel (0) target = $region5
    $region4: #{tpu_custom_call.1} parent=1 // pred_region
      %11 = vsyncadd [#allocation3], 0
      %s13 = sshll.u32 %s0, 4
      %s14 = int_to_ptr.hbm [resolvable:$true] %s13
      %s15 = sshll.u32 [#allocation2], 4
      %s16 = int_to_ptr.vmem [resolvable:$true] %s15
      %18 = dma.hbm_to_vmem [thread:$0]  %s14, 256, %s16, [#allocation3]
    $region5: #{tpu_custom_call.1} parent=1 // pred_fallthru
      _
    // Predicated region
    $region6: #{tpu_custom_call.1} parent=1 // pred_check
      _
    $region7: #{tpu_custom_call.1} parent=1 // pred_check_branch
      %20 = sbr.rel (0) target = $region9
    $region8: #{tpu_custom_call.1} parent=1 // pred_region
      %22 = dma.done [#allocation3], 256
    $region9: #{tpu_custom_call.1} parent=1 // pred_fallthru
      _
    %v23 = vld [vmem:[#allocation2] sm:$0xff]
    %v24 = vld [vmem:[#allocation2 + $0x8] sm:$0xff]
    %25 = vst [vmem:[#allocation5] sm:$0xff] %v23
    %26 = vst [vmem:[#allocation5 + $0x8] sm:$0xff] %v24
    // Predicated region
    $region10: #{tpu_custom_call.1} parent=1 // pred_check
      _
    $region11: #{tpu_custom_call.1} parent=1 // pred_check_branch
      %28 = sbr.rel (0) target = $region13
    $region12: #{tpu_custom_call.1} parent=1 // pred_region
      %30 = vsyncadd [#allocation4], 0
      %s32 = sshll.u32 [#allocation5], 4
      %s33 = int_to_ptr.vmem [resolvable:$true] %s32
      %s34 = sshll.u32 %s1, 4
      %s35 = int_to_ptr.hbm [resolvable:$true] %s34
      %37 = dma.vmem_to_hbm [thread:$0]  %s33, 256, %s35, [#allocation4]
    $region13: #{tpu_custom_call.1} parent=1 // pred_fallthru
      _
    // Predicated region
    $region14: #{tpu_custom_call.1} parent=1 // pred_check
      _
    $region15: #{tpu_custom_call.1} parent=1 // pred_check_branch
      %39 = sbr.rel (0) target = $region17
    $region16: #{tpu_custom_call.1} parent=1 // pred_region
      %41 = dma.done [#allocation4], 256
    $region17: #{tpu_custom_call.1} parent=1 // pred_fallthru
      _
    %42 = vsyncpa [#allocation3], 1
    %43 = vsyncpa [#allocation4], 1

</llo_original>
